<compile_context>
chip_gen: v7x
topology: tpu7x:2x2x1
jax: 0.10.0
libtpu: 0.0.40
codegen_flags: <defaults>
</compile_context>

<pallas_src>
import functools

import jax
import jax.numpy as jnp
from jax.experimental import pallas as pl
from jax.experimental.pallas import tpu as pltpu


def _round_up(x: int, m: int) -> int:
    return (x + m - 1) // m * m


# --------------------------------------------------------------------------- #
# Kernel
# --------------------------------------------------------------------------- #
def _linear_sigmoid_kernel(x_ref, w_ref, b_ref, o_ref):
    """x_ref: (TB, F_in)  w_ref: (F_in, F_out_p)  b_ref: (1, F_out_p)
       o_ref: (TB, out_w) with out_w <= F_out_p."""
    x = x_ref[...]
    if x.dtype != w_ref.dtype:                # bf16-weight path (v6e / v7x)
        x = x.astype(w_ref.dtype)
    acc = jnp.dot(x, w_ref[...], preferred_element_type=jnp.float32)
    acc = acc + b_ref[...]                    # f32 bias, broadcast over rows
    # Exact sigmoid: one EUP op (tanh) + one VALU FMA.  Replaces the
    # exp + approx-reciprocal epilogue that failed the accuracy check.
    y = 0.5 * jnp.tanh(0.5 * acc) + 0.5
    o_ref[...] = y[:, : o_ref.shape[-1]].astype(o_ref.dtype)


# --------------------------------------------------------------------------- #
# Parameter preparation (done ONCE, not per call)
# --------------------------------------------------------------------------- #
def prepare_params(weight, bias, param_dtype=jnp.float32):
    """weight (F_out, F_in) -> (F_in, F_out_p): transposed, lane-padded on the
    OUTPUT dim only (K is left unpadded; the MXU pads short K in-vreg, so
    padding it in HBM only inflates traffic).  bias (F_out,) -> (1, F_out_p)."""
    F_out, F_in = weight.shape
    F_out_p = _round_up(F_out, 128)
    w_t = jnp.zeros((F_in, F_out_p), param_dtype)
    w_t = w_t.at[:, :F_out].set(jnp.asarray(weight).T.astype(param_dtype))
    b2d = jnp.zeros((1, F_out_p), jnp.float32)
    b2d = b2d.at[:, :F_out].set(jnp.asarray(bias).astype(jnp.float32))
    return w_t, b2d


# --------------------------------------------------------------------------- #
# Tiling / VMEM policy
# --------------------------------------------------------------------------- #
def _vmem_budget_bytes() -> int:
    """Generation-aware scoped-VMEM budget (~75% of physical, floor 16 MiB):
    ~96 MiB on v5e/v6e (128 MiB physical), ~48 MiB on v7x (64 MiB physical)."""
    try:
        cap = int(pltpu.get_tpu_info().vmem_capacity_bytes)
    except Exception:
        cap = 64 << 20            # conservative fallback = smallest (v7x) VMEM
    return max(cap * 3 // 4, 16 << 20)


def _pick_batch_tile(B, row_io_bytes, resident_bytes, budget_bytes,
                     max_tile=1024):
    """Largest batch tile (multiple of 8, <= max_tile) such that the
    double-buffered x/out row tiles plus the resident single-buffered W/bias
    fit the VMEM budget.  max_tile=1024 is a multiple of both the v5e (128)
    and v6e/v7x (256) MXU M depth."""
    b_needed = _round_up(max(B, 1), 8)
    tb = min(max_tile, b_needed)
    while tb > 8 and resident_bytes + 2 * tb * row_io_bytes > budget_bytes:
        tb = max(8, _round_up(tb // 2, 8))
    # If one tile would cover the whole batch, split in two so the "parallel"
    # grid axis can shard across both TensorCores on v7x.
    if tb >= b_needed and tb > 8:
        tb = max(8, _round_up(-(-b_needed // 2), 8))
    return tb


def _resident_spec(shape):
    """Constant-index BlockSpec for an operand that stays resident in VMEM.
    Single-buffered: double-buffering a constant block only wastes VMEM."""
    try:
        return pl.BlockSpec(shape, lambda i: (0,) * len(shape),
                            pipeline_mode=pl.Buffered(1))
    except TypeError:            # older jax without pipeline_mode support
        return pl.BlockSpec(shape, lambda i: (0,) * len(shape))


# --------------------------------------------------------------------------- #
# Forward pass
# --------------------------------------------------------------------------- #
@functools.partial(jax.jit, static_argnames=("out_features",))
def net_forward(x, w_t, b2d, out_features):
    """x: (B, F_in);  w_t: (F_in, F_out_p) padded+transposed;  b2d: (1, F_out_p)."""
    B, F_in = x.shape
    F_in_w, F_out_p = w_t.shape
    assert F_in_w == F_in, "weight was prepared for a different in_features"

    x_item = jnp.dtype(x.dtype).itemsize
    w_item = jnp.dtype(w_t.dtype).itemsize

    # Narrow true outputs (< 128 lanes) are written unpadded (masked vst):
    # for a mem-bound kernel the byte reduction + dropping the post-kernel
    # slice pass wins; 128-multiples keep the lane-dense layout.
    if out_features % 128 == 0 or out_features < 128:
        out_w = out_features
    else:
        out_w = F_out_p

    budget = _vmem_budget_bytes()
    resident = F_in * F_out_p * w_item + F_out_p * 4   # W + bias, single-buffered
    row_io = (F_in + out_w) * x_item                   # x row in + out row out
    TB = _pick_batch_tile(B, row_io, resident, budget)
    # TODO(synk): if a real model's W ever exceeds `budget`, add an F_out grid
    # axis (marked "arbitrary") and tile W over N instead of shrinking TB.

    B_p = _round_up(B, TB)
    x_p = x if B_p == B else jnp.zeros((B_p, F_in), x.dtype).at[:B].set(x)

    grid = (B_p // TB,)

    cost = pl.CostEstimate(
        flops=2 * B_p * F_in * F_out_p,
        transcendentals=B_p * out_w,
        bytes_accessed=(B_p * F_in * x_item + F_in * F_out_p * w_item
                        + F_out_p * 4 + B_p * out_w * x_item),
    )

    out_full = pl.pallas_call(
        _linear_sigmoid_kernel,
        out_shape=jax.ShapeDtypeStruct((B_p, out_w), x.dtype),
        grid=grid,
        in_specs=[
            pl.BlockSpec((TB, F_in), lambda i: (i, 0)),   # x tile (pipelined)
            _resident_spec((F_in, F_out_p)),              # W resident, 1 buffer
            _resident_spec((1, F_out_p)),                 # bias resident, 1 buffer
        ],
        out_specs=pl.BlockSpec((TB, out_w), lambda i: (i, 0)),
        compiler_params=pltpu.CompilerParams(
            dimension_semantics=("parallel",),
            vmem_limit_bytes=budget,
        ),
        cost_estimate=cost,
    )(x_p, w_t, b2d)

    if B_p == B and out_w == out_features:
        return out_full
    return out_full[:B, :out_features]


# --------------------------------------------------------------------------- #
# Test
# --------------------------------------------------------------------------- #
if __name__ == "__main__":
    # len(wickelfeatures) is undefined in the original snippet -> small
    # synthetic feature count.
    B, F_in = 8, 32
    output_multiplier = 1
    F_out = output_multiplier * F_in

    key = jax.random.PRNGKey(0)
    kx, kw, kb = jax.random.split(key, 3)

    x = jax.random.normal(kx, (B, F_in), dtype=jnp.float32)
    bound = 1.0 / (F_in ** 0.5)          # PyTorch nn.Linear default init range
    weight = jax.random.uniform(kw, (F_out, F_in), jnp.float32, -bound, bound)
    bias = jax.random.uniform(kb, (F_out,), jnp.float32, -bound, bound)

    # Transpose + lane-pad ONCE.  Use param_dtype=jnp.bfloat16 on v6e/v7x to
    # halve weight traffic; kept f32 here so the tolerance check stays tight.
    w_t, b2d = prepare_params(weight, bias, param_dtype=jnp.float32)

    out = jax.block_until_ready(net_forward(x, w_t, b2d, F_out))

    ref = jax.nn.sigmoid(x @ weight.T + bias)
    assert out.shape == (B, F_out), out.shape
    # The sigmoid epilogue is exact; the residual difference comes from the
    # TPU's default f32 matmul precision (bf16 MXU passes) differing between
    # the kernel's dot and the XLA reference dot.
    err = float(jnp.max(jnp.abs(out - ref)))
    assert err < 5e-3, err

    print("KERNEL_OK")
</pallas_src>

<mosaic_0001>
module attributes {stable_mosaic.version = 11 : i64} {
  func.func @_linear_sigmoid_kernel(%arg0: i32, %arg1: memref<8x32xf32, #tpu.memory_space<vmem>>, %arg2: memref<32x128xf32, #tpu.memory_space<vmem>>, %arg3: memref<1x128xf32, #tpu.memory_space<vmem>>, %arg4: memref<8x32xf32, #tpu.memory_space<vmem>>) attributes {dimension_semantics = [#tpu.dimension_semantics<parallel>], iteration_bounds = array<i64: 1>, scalar_prefetch = 0 : i64, scratch_operands = 0 : i64, tpu.core_type = #tpu.core_type<tc>, window_params = [{transform_indices = @transform_0, window_bounds = array<i64: 8, 32>}, {pipeline_mode = #tpu.pipeline_mode<synchronous>, transform_indices = @transform_1, window_bounds = array<i64: 32, 128>}, {pipeline_mode = #tpu.pipeline_mode<synchronous>, transform_indices = @transform_2, window_bounds = array<i64: 1, 128>}, {transform_indices = @transform_3, window_bounds = array<i64: 8, 32>}]} {
    %c0 = arith.constant 0 : index
    %c0_0 = arith.constant 0 : index
    %0 = vector.load %arg1[%c0, %c0_0] : memref<8x32xf32, #tpu.memory_space<vmem>>, vector<8x32xf32>
    %c0_1 = arith.constant 0 : index
    %c0_2 = arith.constant 0 : index
    %1 = vector.load %arg2[%c0_1, %c0_2] : memref<32x128xf32, #tpu.memory_space<vmem>>, vector<32x128xf32>
    %cst = arith.constant dense<0.000000e+00> : vector<8x128xf32>
    %2 = tpu.matmul %0, %1, %cst {dimension_numbers = #tpu.dot_dimension_numbers<[1], [0], [0], [1], [0, 0, 1, 1], [], []>} : vector<8x32xf32>, vector<32x128xf32>, vector<8x128xf32> -> vector<8x128xf32>
    %c0_3 = arith.constant 0 : index
    %c0_4 = arith.constant 0 : index
    %3 = vector.load %arg3[%c0_3, %c0_4] : memref<1x128xf32, #tpu.memory_space<vmem>>, vector<1x128xf32>
    %4 = vector.broadcast %3 : vector<1x128xf32> to vector<8x128xf32>
    %5 = arith.addf %2, %4 : vector<8x128xf32>
    %cst_5 = arith.constant 5.000000e-01 : f32
    %6 = vector.broadcast %cst_5 : f32 to vector<8x128xf32>
    %7 = arith.mulf %6, %5 : vector<8x128xf32>
    %8 = math.tanh %7 : vector<8x128xf32>
    %cst_6 = arith.constant 5.000000e-01 : f32
    %9 = vector.broadcast %cst_6 : f32 to vector<8x128xf32>
    %10 = arith.mulf %9, %8 : vector<8x128xf32>
    %cst_7 = arith.constant 5.000000e-01 : f32
    %11 = vector.broadcast %cst_7 : f32 to vector<8x128xf32>
    %12 = arith.addf %10, %11 : vector<8x128xf32>
    %13 = vector.extract_strided_slice %12 {offsets = [0, 0], sizes = [8, 32], strides = [1, 1]} : vector<8x128xf32> to vector<8x32xf32>
    %c0_8 = arith.constant 0 : index
    %c0_9 = arith.constant 0 : index
    %14 = vector.load %arg4[%c0_8, %c0_9] : memref<8x32xf32, #tpu.memory_space<vmem>>, vector<8x32xf32>
    tpu.vector_store %arg4[%c0_8, %c0_9], %13 {strides = array<i32>} : memref<8x32xf32, #tpu.memory_space<vmem>>, vector<8x32xf32>,
    return
  }
  func.func @transform_0(%arg0: i32) -> (i32, i32) {
    %c0_i32 = arith.constant 0 : i32
    %c0_i32_0 = arith.constant 0 : i32
    return %arg0, %c0_i32 : i32, i32
  }
  func.func @transform_1(%arg0: i32) -> (i32, i32) {
    %c0_i32 = arith.constant 0 : i32
    %c0_i32_0 = arith.constant 0 : i32
    %c0_i32_1 = arith.constant 0 : i32
    return %c0_i32, %c0_i32_0 : i32, i32
  }
  func.func @transform_2(%arg0: i32) -> (i32, i32) {
    %c0_i32 = arith.constant 0 : i32
    %c0_i32_0 = arith.constant 0 : i32
    %c0_i32_1 = arith.constant 0 : i32
    return %c0_i32, %c0_i32_0 : i32, i32
  }
  func.func @transform_3(%arg0: i32) -> (i32, i32) {
    %c0_i32 = arith.constant 0 : i32
    %c0_i32_0 = arith.constant 0 : i32
    return %arg0, %c0_i32 : i32, i32
  }
}

</mosaic_0001>

<llo_original>
// kernel: net_forward.1
$region0: #{net_forward.1}
  #allocation0 [shape = 'u32[]', space=smem, size = 0x4, offset = 0x4, fixed_abs, tag = 'smem constant byte address 0x4 - core index']
  #allocation1 [shape = 'u32[144,128]{1,0:T(1,128)}', space=vmem, size = 0x12000, scoped, tag = 'internal scratch']
  %s0 = inlined_call_operand.hbm [shape: f32[8,32], index: 0, kind: input, shape index: {}]
  %s1 = inlined_call_operand.hbm [shape: f32[32,128], index: 1, kind: input, shape index: {}]
  %s2 = inlined_call_operand.vmem [shape: f32[1,128], index: 2, kind: input, shape index: {}]
  %s3 = inlined_call_operand.hbm [shape: f32[8,32], index: 3, kind: output, shape index: {}]
  %s4 = sld [smem:[#allocation0]]
  $region30: #{net_forward.1} parent=0
    _
  %s6 = ssub.s32 1, %s4
  %s7 = scalar_select 0, %s6, %s4
  $region1: #{net_forward.1} parent=0
    #allocation2 [shape = 'u8[4096]{0}', space=vmem, size = 0x1000, scoped, tag = 'input window, operand 0, single buffered']
    #allocation3 [shape = 's32[1]{0}', space=sflag, size = 0x4, scoped, tag = 'scoped memory for net_forward.1']
    #allocation4 [shape = 's32[1]{0}', space=sflag, size = 0x4, scoped, tag = 'scoped memory for net_forward.1']
    #allocation5 [shape = 'u8[16384]{0}', space=vmem, size = 0x4000, scoped, tag = 'input window, operand 1, single buffered']
    #allocation6 [shape = 's32[1]{0}', space=sflag, size = 0x4, scoped, tag = 'scoped memory for net_forward.1']
    #allocation7 [shape = 'u8[4096]{0}', space=vmem, size = 0x1000, scoped, tag = 'output window, operand 0, single buffered']
    %8 = vsyncpa [#allocation3], 0
    %9 = vsyncpa [#allocation6], 0
    %10 = vsyncpa [#allocation4], 0
    // Predicated region
    $region2: #{net_forward.1} parent=1 // pred_check
      _
    $region3: #{net_forward.1} parent=1 // pred_check_branch
      %12 = sbr.rel (0) target = $region5
    $region4: #{net_forward.1} parent=1 // pred_region
      %s14 = ssub.s32 128, 128
      %15 = vsyncadd [#allocation3], %s14
      %s17 = sshll.u32 [#allocation2], 4
      %s18 = int_to_ptr.vmem [resolvable:$true] %s17
      %20 = dma.hbm_to_vmem [thread:$0]  %s0, 128, %s18, [#allocation3]
    $region5: #{net_forward.1} parent=1 // pred_fallthru
      _
    // Predicated region
    $region6: #{net_forward.1} parent=1 // pred_check
      _
    $region7: #{net_forward.1} parent=1 // pred_check_branch
      %22 = sbr.rel (0) target = $region9
    $region8: #{net_forward.1} parent=1 // pred_region
      %s24 = ssub.s32 512, 512
      %25 = vsyncadd [#allocation6], %s24
      %s26 = sshll.u32 [#allocation5], 4
      %s27 = int_to_ptr.vmem [resolvable:$true] %s26
      %32 = dma.hbm_to_vmem [thread:$0]  %s1, 512, %s27, [#allocation6], 128, 128, 8
    $region9: #{net_forward.1} parent=1 // pred_fallthru
      _
    // Predicated region
    $region10: #{net_forward.1} parent=1 // pred_check
      _
    $region11: #{net_forward.1} parent=1 // pred_check_branch
      %34 = sbr.rel (0) target = $region13
    $region12: #{net_forward.1} parent=1 // pred_region
      _
    $region13: #{net_forward.1} parent=1 // pred_fallthru
      _
    // Predicated region
    $region14: #{net_forward.1} parent=1 // pred_check
      _
    $region15: #{net_forward.1} parent=1 // pred_check_branch
      %36 = sbr.rel (0) target = $region17
    $region16: #{net_forward.1} parent=1 // pred_region
      %37 = dma.done [#allocation3], 128
    $region17: #{net_forward.1} parent=1 // pred_fallthru
      _
    // Predicated region
    $region18: #{net_forward.1} parent=1 // pred_check
      _
    $region19: #{net_forward.1} parent=1 // pred_check_branch
      %39 = sbr.rel (0) target = $region21
    $region20: #{net_forward.1} parent=1 // pred_region
      %40 = dma.done [#allocation6], 512
    $region21: #{net_forward.1} parent=1 // pred_fallthru
      _
    %v41 = vld [vmem:[#allocation2] sm:$0xff]
    %v42 = vld [vmem:[#allocation5] sm:$0xff]
    %v43 = vld [vmem:[#allocation5 + $0x8] sm:$0xff]
    %v44 = vld [vmem:[#allocation5 + $0x10] sm:$0xff]
    %v45 = vld [vmem:[#allocation5 + $0x18] sm:$0xff]
    %v46 = vld [vmem:[%s2] sm:$0x1]
    %v48 = vlaneseq
    %v49 = vshrl.u32 %v48, 7
    %v50 = vsub.s32 0, %v49
    %v51 = vrot.slane %v46, %v50
    %vm53 = vcmask 261120
    %v55 = vsel %vm53, %v41, 0
    %57 = vmatprep.subr.mxu0 0.0
    %58 = vmatpush1.msra.mxu0 %v42
    %59 = vmatprep.subr.mxu0 0.0
    %60 = vmatpush1.msra.mxu0 %v43
    %61 = vmatprep.subr.mxu0 0.0
    %62 = vmatpush1.msra.mxu0 %v44
    %63 = vmatprep.subr.mxu0 0.0
    %64 = vmatpush1.msra.mxu0 %v45
    %65 = vmatprep.subr.mxu0 0.0
    %66 = vmatpush1.msra.mxu0 0.0
    %67 = vmatprep.subr.mxu0 0.0
    %68 = vmatpush1.msra.mxu0 0.0
    %69 = vmatprep.subr.mxu0 0.0
    %70 = vmatpush1.msra.mxu0 0.0
    %71 = vmatprep.subr.mxu0 0.0
    %72 = vmatpush1.msra.mxu0 0.0
    %73 = vmatprep.subr.mxu0 0.0
    %74 = vmatpush1.msra.mxu0 0.0
    %75 = vmatprep.subr.mxu0 0.0
    %76 = vmatpush1.msra.mxu0 0.0
    %77 = vmatprep.subr.mxu0 0.0
    %78 = vmatpush1.msra.mxu0 0.0
    %79 = vmatprep.subr.mxu0 0.0
    %80 = vmatpush1.msra.mxu0 0.0
    %81 = vmatprep.subr.mxu0 0.0
    %82 = vmatpush1.msra.mxu0 0.0
    %83 = vmatprep.subr.mxu0 0.0
    %84 = vmatpush1.msra.mxu0 0.0
    %85 = vmatprep.subr.mxu0 0.0
    %86 = vmatpush1.msra.mxu0 0.0
    %87 = vmatprep.subr.mxu0 0.0
    %88 = vmatpush1.msra.mxu0 0.0
    %89 = vmatprep.subr.mxu0 0.0
    %90 = vmatpush1.msra.mxu0 0.0
    %91 = vmatprep.subr.mxu0 0.0
    %92 = vmatpush1.msra.mxu0 0.0
    %93 = vmatprep.subr.mxu0 0.0
    %94 = vmatpush1.msra.mxu0 0.0
    %95 = vmatprep.subr.mxu0 0.0
    %96 = vmatpush1.msra.mxu0 0.0
    %97 = vmatprep.subr.mxu0 0.0
    %98 = vmatpush1.msra.mxu0 0.0
    %99 = vmatprep.subr.mxu0 0.0
    %100 = vmatpush1.msra.mxu0 0.0
    %101 = vmatprep.subr.mxu0 0.0
    %102 = vmatpush1.msra.mxu0 0.0
    %103 = vmatprep.subr.mxu0 0.0
    %104 = vmatpush1.msra.mxu0 0.0
    %105 = vmatprep.subr.mxu0 0.0
    %106 = vmatpush1.msra.mxu0 0.0
    %107 = vmatprep.subr.mxu0 0.0
    %108 = vmatpush1.msra.mxu0 0.0
    %109 = vmatprep.subr.mxu0 0.0
    %110 = vmatpush1.msra.mxu0 0.0
    %111 = vmatprep.subr.mxu0 0.0
    %112 = vmatpush1.msra.mxu0 0.0
    %113 = vmatprep.subr.mxu0 0.0
    %114 = vmatpush1.msra.mxu0 0.0
    %115 = vmatprep.subr.mxu0 0.0
    %116 = vmatpush1.msra.mxu0 0.0
    %117 = vmatprep.subr.mxu0 0.0
    %118 = vmatpush1.msra.mxu0 0.0
    %119 = vmatprep.subr.mxu0 0.0
    %120 = vmatpush1.msra.mxu0 0.0
    %121 = vmatprep.mubr.f32.mxu0 0.0
    %122 = vmatmul.mubr.f32.gmra.mrb[0].mxu0 %v55
    %v123 = vpop.f32.mrb[0].mxu0
    %v124 = vadd.f32 %v51, %v123
    %v125 = vpop.f32.mrb[0].mxu0
    %126 = vdwg.mxu0
    %v127 = vmul.f32 %v124, 0.5
    %v128 = vtanh.pop %v127
    %v129 = vmul.f32 %v128, 0.5
    %v130 = vadd.f32 %v129, 0.5
    %131 = vst.msk [vmem:[#allocation7] sm:$0xff] %vm53, %v130
    // Predicated region
    $region22: #{net_forward.1} parent=1 // pred_check
      _
    $region23: #{net_forward.1} parent=1 // pred_check_branch
      %133 = sbr.rel (0) target = $region25
    $region24: #{net_forward.1} parent=1 // pred_region
      %s135 = ssub.s32 128, 128
      %136 = vsyncadd [#allocation4], %s135
      %s138 = sshll.u32 [#allocation7], 4
      %s139 = int_to_ptr.vmem [resolvable:$true] %s138
      %141 = dma.vmem_to_hbm [thread:$0]  %s139, 128, %s3, [#allocation4]
    $region25: #{net_forward.1} parent=1 // pred_fallthru
      _
    // Predicated region
    $region26: #{net_forward.1} parent=1 // pred_check
      _
    $region27: #{net_forward.1} parent=1 // pred_check_branch
      %143 = sbr.rel (0) target = $region29
    $region28: #{net_forward.1} parent=1 // pred_region
      %144 = dma.done [#allocation4], 128
    $region29: #{net_forward.1} parent=1 // pred_fallthru
      _
    %145 = vsyncpa [#allocation3], 1
    %146 = vsyncpa [#allocation6], 1
    %147 = vsyncpa [#allocation4], 1

</llo_original>
